<compile_context>
chip_gen: v7x
topology: tpu7x:2x2x1
jax: 0.10.0
libtpu: 0.0.40
codegen_flags: <defaults>
</compile_context>

<pallas_src>
import jax
import jax.numpy as jnp
from jax.experimental import pallas as pl
from jax.experimental.pallas import tpu as pltpu

EMB_DIM = 300
HID = 150


def _round_up(x, m):
    return ((x + m - 1) // m) * m


def baseline_kernel(pooled_ref, w1_ref, b1_ref, w2_ref, b2_ref, w3_ref, out_ref):
    # pooled_ref: (TB, 300) f32  (already summed over seq; 1/S folded into w1)
    # w1: (300,150) b1: (1,150) w2: (150,150) b2: (1,150) w3: (1,150) row
    # out_ref: (1, TB) f32 lane-dense row (b3 added in the wrapper)
    h = pooled_ref[...]

    # fc1 + relu (MXU)
    h = jnp.dot(h, w1_ref[...], preferred_element_type=jnp.float32) + b1_ref[...]
    h = jnp.maximum(h, 0.0)

    # fc2 + relu (MXU)
    h = jnp.dot(h, w2_ref[...], preferred_element_type=jnp.float32) + b2_ref[...]
    h = jnp.maximum(h, 0.0)

    # fc3 (N=1): contract the feature dim of w3 (1,150) against h (TB,150) so the
    # result lands directly as a lane-dense (1, TB) row -> unmasked vector stores.
    out_ref[...] = jnp.einsum('of,bf->ob', w3_ref[...], h,
                              preferred_element_type=jnp.float32)


def init_params(key, vocab_size):
    """Deterministic init mirroring nn.Linear's U(-1/sqrt(fan_in), 1/sqrt(fan_in))."""
    ks = jax.random.split(key, 7)
    emb_table = jax.random.normal(ks[0], (vocab_size, EMB_DIM), jnp.float32)

    def linear(kw, kb, fan_in, fan_out):
        bound = 1.0 / jnp.sqrt(fan_in)
        # stored transposed vs torch: (in, out) so kernel computes h @ W + b
        w = jax.random.uniform(kw, (fan_in, fan_out), jnp.float32, -bound, bound)
        b = jax.random.uniform(kb, (1, fan_out), jnp.float32, -bound, bound)
        return w, b

    w1, b1 = linear(ks[1], ks[2], EMB_DIM, HID)
    w2, b2 = linear(ks[3], ks[4], HID, HID)
    w3, b3 = linear(ks[5], ks[6], HID, 1)
    return emb_table, (w1, b1, w2, b2, w3, b3)


def baseline_forward(x, emb_table, params, tb=2048):
    """x: (B, S) int32 token ids -> (B,) f32."""
    w1, b1, w2, b2, w3, b3 = params
    B, S = x.shape

    # TODO(synk): data-dependent embedding gather stays in plain JAX; XLA fuses the
    # gather with the sequence-sum so only a (B, 300) tensor crosses HBM.  For tiny
    # vocabs this could be pulled in-kernel (VMEM-resident table + in-kernel gather)
    # to remove the pooled round-trip; for GloVe-scale vocabs the table cannot be
    # VMEM-resident, so the JAX path is the general one.
    pooled = jnp.take(emb_table, x, axis=0).sum(axis=1)          # (B, 300) f32

    # Fold the 1/S mean scale into w1 (linear, so exactly equivalent).
    w1_scaled = w1 * (1.0 / S)
    w3_row = w3.reshape(1, HID)                                  # (1, 150)

    # Batch tile: multiple of 128 (lane-dense output row), large by default to
    # amortize per-step overhead, capped at ~B/2 so the grid keeps >=2 steps for
    # the two TensorCores on v7x (harmless on v5e/v6e).
    TB = max(128, min(tb, _round_up(-(-B // 2), 128)))
    Bp = _round_up(B, TB)
    if Bp != B:
        pooled = jnp.pad(pooled, ((0, Bp - B), (0, 0)))
    grid = (Bp // TB,)

    cost = pl.CostEstimate(
        flops=2 * Bp * (EMB_DIM * HID + HID * HID + HID),
        transcendentals=0,
        bytes_accessed=Bp * EMB_DIM * 4
        + (EMB_DIM * HID + HID * HID + 3 * HID) * 4
        + Bp * 4,
    )

    out = pl.pallas_call(
        baseline_kernel,
        out_shape=jax.ShapeDtypeStruct((1, Bp), jnp.float32),
        grid_spec=pltpu.PrefetchScalarGridSpec(
            num_scalar_prefetch=0,
            grid=grid,
            in_specs=[
                pl.BlockSpec((TB, EMB_DIM), lambda i: (i, 0)),    # pooled tile
                pl.BlockSpec((EMB_DIM, HID), lambda i: (0, 0)),   # w1 resident
                pl.BlockSpec((1, HID), lambda i: (0, 0)),         # b1
                pl.BlockSpec((HID, HID), lambda i: (0, 0)),       # w2
                pl.BlockSpec((1, HID), lambda i: (0, 0)),         # b2
                pl.BlockSpec((1, HID), lambda i: (0, 0)),         # w3 row
            ],
            out_specs=pl.BlockSpec((1, TB), lambda i: (0, i)),    # lane-dense
        ),
        compiler_params=pltpu.CompilerParams(
            dimension_semantics=("parallel",),
        ),
        cost_estimate=cost,
    )(pooled, w1_scaled, b1, w2, b2, w3_row)

    # b3 (scalar) added here instead of burning a padded (8,128) VMEM tile in-kernel.
    # Padded tail batch entries live in the trailing lanes and are sliced off here.
    return out.reshape(-1)[:B] + b3.reshape(())                  # flatten -> (B,)


def baseline_reference(x, emb_table, params):
    """Pure-JAX reference for correctness check (mirrors the torch forward)."""
    w1, b1, w2, b2, w3, b3 = params
    h = jnp.take(emb_table, x, axis=0).astype(jnp.float32)
    h = jnp.mean(h, axis=1)
    h = jnp.maximum(h @ w1 + b1, 0.0)
    h = jnp.maximum(h @ w2 + b2, 0.0)
    h = h @ w3 + b3
    return h.reshape(-1)


if __name__ == "__main__":
    key = jax.random.PRNGKey(0)
    k_param, k_x1, k_x2, k_x3 = jax.random.split(key, 4)

    VOCAB = 64
    emb_table, params = init_params(k_param, VOCAB)

    # Small case: B padded up to the minimum TB=128, single grid step.
    B, S = 8, 8
    x = jax.random.randint(k_x1, (B, S), 0, VOCAB, dtype=jnp.int32)
    out = jax.block_until_ready(baseline_forward(x, emb_table, params))
    ref = jax.block_until_ready(baseline_reference(x, emb_table, params))
    assert out.shape == (B,), out.shape
    assert jnp.allclose(out, ref, atol=1e-3, rtol=1e-3), (out, ref)

    # Non-multiple-of-8 batch to exercise the pad-and-slice path.
    B2, S2 = 10, 12
    x2 = jax.random.randint(k_x2, (B2, S2), 0, VOCAB, dtype=jnp.int32)
    out2 = jax.block_until_ready(baseline_forward(x2, emb_table, params))
    ref2 = jax.block_until_ready(baseline_reference(x2, emb_table, params))
    assert out2.shape == (B2,), out2.shape
    assert jnp.allclose(out2, ref2, atol=1e-3, rtol=1e-3), (out2, ref2)

    # Multi-step grid + tail padding + lane-dense multi-block writeback:
    # B=300 -> TB=256, Bp=512, grid=(2,).
    B3, S3 = 300, 16
    x3 = jax.random.randint(k_x3, (B3, S3), 0, VOCAB, dtype=jnp.int32)
    out3 = jax.block_until_ready(baseline_forward(x3, emb_table, params))
    ref3 = jax.block_until_ready(baseline_reference(x3, emb_table, params))
    assert out3.shape == (B3,), out3.shape
    assert jnp.allclose(out3, ref3, atol=1e-3, rtol=1e-3), (out3, ref3)

    print("KERNEL_OK")
</pallas_src>

<mosaic_0001>
module attributes {stable_mosaic.version = 11 : i64} {
  func.func @baseline_kernel(%arg0: i32, %arg1: memref<128x300xf32, #tpu.memory_space<vmem>>, %arg2: memref<300x150xf32, #tpu.memory_space<vmem>>, %arg3: memref<1x150xf32, #tpu.memory_space<vmem>>, %arg4: memref<150x150xf32, #tpu.memory_space<vmem>>, %arg5: memref<1x150xf32, #tpu.memory_space<vmem>>, %arg6: memref<1x150xf32, #tpu.memory_space<vmem>>, %arg7: memref<1x128xf32, #tpu.memory_space<vmem>>) attributes {dimension_semantics = [#tpu.dimension_semantics<parallel>], iteration_bounds = array<i64: 1>, scalar_prefetch = 0 : i64, scratch_operands = 0 : i64, tpu.core_type = #tpu.core_type<tc>, window_params = [{transform_indices = @transform_0, window_bounds = array<i64: 128, 300>}, {pipeline_mode = #tpu.pipeline_mode<synchronous>, transform_indices = @transform_1, window_bounds = array<i64: 300, 150>}, {pipeline_mode = #tpu.pipeline_mode<synchronous>, transform_indices = @transform_2, window_bounds = array<i64: 1, 150>}, {pipeline_mode = #tpu.pipeline_mode<synchronous>, transform_indices = @transform_3, window_bounds = array<i64: 150, 150>}, {pipeline_mode = #tpu.pipeline_mode<synchronous>, transform_indices = @transform_4, window_bounds = array<i64: 1, 150>}, {pipeline_mode = #tpu.pipeline_mode<synchronous>, transform_indices = @transform_5, window_bounds = array<i64: 1, 150>}, {transform_indices = @transform_6, window_bounds = array<i64: 1, 128>}]} {
    %c0 = arith.constant 0 : index
    %c0_0 = arith.constant 0 : index
    %0 = vector.load %arg1[%c0, %c0_0] : memref<128x300xf32, #tpu.memory_space<vmem>>, vector<128x300xf32>
    %c0_1 = arith.constant 0 : index
    %c0_2 = arith.constant 0 : index
    %1 = vector.load %arg2[%c0_1, %c0_2] : memref<300x150xf32, #tpu.memory_space<vmem>>, vector<300x150xf32>
    %cst = arith.constant dense<0.000000e+00> : vector<128x150xf32>
    %2 = tpu.matmul %0, %1, %cst {dimension_numbers = #tpu.dot_dimension_numbers<[1], [0], [0], [1], [0, 0, 1, 1], [], []>} : vector<128x300xf32>, vector<300x150xf32>, vector<128x150xf32> -> vector<128x150xf32>
    %c0_3 = arith.constant 0 : index
    %c0_4 = arith.constant 0 : index
    %3 = vector.load %arg3[%c0_3, %c0_4] : memref<1x150xf32, #tpu.memory_space<vmem>>, vector<1x150xf32>
    %4 = vector.broadcast %3 : vector<1x150xf32> to vector<128x150xf32>
    %5 = arith.addf %2, %4 : vector<128x150xf32>
    %cst_5 = arith.constant 0.000000e+00 : f32
    %6 = vector.broadcast %cst_5 : f32 to vector<128x150xf32>
    %7 = arith.maximumf %5, %6 : vector<128x150xf32>
    %c0_6 = arith.constant 0 : index
    %c0_7 = arith.constant 0 : index
    %8 = vector.load %arg4[%c0_6, %c0_7] : memref<150x150xf32, #tpu.memory_space<vmem>>, vector<150x150xf32>
    %cst_8 = arith.constant dense<0.000000e+00> : vector<128x150xf32>
    %9 = tpu.matmul %7, %8, %cst_8 {dimension_numbers = #tpu.dot_dimension_numbers<[1], [0], [0], [1], [0, 0, 1, 1], [], []>} : vector<128x150xf32>, vector<150x150xf32>, vector<128x150xf32> -> vector<128x150xf32>
    %c0_9 = arith.constant 0 : index
    %c0_10 = arith.constant 0 : index
    %10 = vector.load %arg5[%c0_9, %c0_10] : memref<1x150xf32, #tpu.memory_space<vmem>>, vector<1x150xf32>
    %11 = vector.broadcast %10 : vector<1x150xf32> to vector<128x150xf32>
    %12 = arith.addf %9, %11 : vector<128x150xf32>
    %cst_11 = arith.constant 0.000000e+00 : f32
    %13 = vector.broadcast %cst_11 : f32 to vector<128x150xf32>
    %14 = arith.maximumf %12, %13 : vector<128x150xf32>
    %c0_12 = arith.constant 0 : index
    %c0_13 = arith.constant 0 : index
    %15 = vector.load %arg6[%c0_12, %c0_13] : memref<1x150xf32, #tpu.memory_space<vmem>>, vector<1x150xf32>
    "tpu.trace_start"() <{level = 10 : i32, message = "of,bf->ob"}> : () -> ()
    %cst_14 = arith.constant dense<0.000000e+00> : vector<1x128xf32>
    %16 = tpu.matmul %15, %14, %cst_14 {dimension_numbers = #tpu.dot_dimension_numbers<[1], [1], [0], [0], [0, 0, 1, 0], [], []>} : vector<1x150xf32>, vector<128x150xf32>, vector<1x128xf32> -> vector<1x128xf32>
    "tpu.trace_stop"() : () -> ()
    %c0_15 = arith.constant 0 : index
    %c0_16 = arith.constant 0 : index
    %17 = vector.load %arg7[%c0_15, %c0_16] : memref<1x128xf32, #tpu.memory_space<vmem>>, vector<1x128xf32>
    tpu.vector_store %arg7[%c0_15, %c0_16], %16 {strides = array<i32>} : memref<1x128xf32, #tpu.memory_space<vmem>>, vector<1x128xf32>,
    return
  }
  func.func @transform_0(%arg0: i32) -> (i32, i32) {
    %c0_i32 = arith.constant 0 : i32
    %c0_i32_0 = arith.constant 0 : i32
    return %arg0, %c0_i32 : i32, i32
  }
  func.func @transform_1(%arg0: i32) -> (i32, i32) {
    %c0_i32 = arith.constant 0 : i32
    %c0_i32_0 = arith.constant 0 : i32
    %c0_i32_1 = arith.constant 0 : i32
    return %c0_i32, %c0_i32_0 : i32, i32
  }
  func.func @transform_2(%arg0: i32) -> (i32, i32) {
    %c0_i32 = arith.constant 0 : i32
    %c0_i32_0 = arith.constant 0 : i32
    %c0_i32_1 = arith.constant 0 : i32
    return %c0_i32, %c0_i32_0 : i32, i32
  }
  func.func @transform_3(%arg0: i32) -> (i32, i32) {
    %c0_i32 = arith.constant 0 : i32
    %c0_i32_0 = arith.constant 0 : i32
    %c0_i32_1 = arith.constant 0 : i32
    return %c0_i32, %c0_i32_0 : i32, i32
  }
  func.func @transform_4(%arg0: i32) -> (i32, i32) {
    %c0_i32 = arith.constant 0 : i32
    %c0_i32_0 = arith.constant 0 : i32
    %c0_i32_1 = arith.constant 0 : i32
    return %c0_i32, %c0_i32_0 : i32, i32
  }
  func.func @transform_5(%arg0: i32) -> (i32, i32) {
    %c0_i32 = arith.constant 0 : i32
    %c0_i32_0 = arith.constant 0 : i32
    %c0_i32_1 = arith.constant 0 : i32
    return %c0_i32, %c0_i32_0 : i32, i32
  }
  func.func @transform_6(%arg0: i32) -> (i32, i32) {
    %c0_i32 = arith.constant 0 : i32
    %c0_i32_0 = arith.constant 0 : i32
    return %c0_i32, %arg0 : i32, i32
  }
}

</mosaic_0001>

<llo_original>
// kernel: tpu_custom_call.1
$region0: #{tpu_custom_call.1}
  #allocation0 [shape = 'u32[]', space=smem, size = 0x4, offset = 0x4, fixed_abs, tag = 'smem constant byte address 0x4 - core index']
  #allocation1 [shape = 'u32[144,128]{1,0:T(1,128)}', space=vmem, size = 0x12000, scoped, tag = 'internal scratch']
  %s0 = inlined_call_operand.vmem [shape: f32[128,300], index: 0, kind: input, shape index: {}]
  %s1 = inlined_call_operand.vmem [shape: f32[300,150], index: 1, kind: input, shape index: {}]
  %s2 = inlined_call_operand.vmem [shape: f32[1,150], index: 2, kind: input, shape index: {}]
  %s3 = inlined_call_operand.vmem [shape: f32[150,150], index: 3, kind: input, shape index: {}]
  %s4 = inlined_call_operand.vmem [shape: f32[1,150], index: 4, kind: input, shape index: {}]
  %s5 = inlined_call_operand.vmem [shape: f32[1,150], index: 5, kind: input, shape index: {}]
  %s6 = inlined_call_operand.hbm [shape: f32[1,128], index: 6, kind: output, shape index: {}]
  %s7 = sld [smem:[#allocation0]]
  $region34: #{tpu_custom_call.1} parent=0
    _
  %s9 = ssub.s32 1, %s7
  %s10 = scalar_select 0, %s9, %s7
  $region1: #{tpu_custom_call.1} parent=0
    #allocation2 [shape = 'u8[512]{0}', space=vmem, size = 0x400, scoped, tag = 'output window, operand 0, single buffered']
    #allocation3 [shape = 's32[1]{0}', space=sflag, size = 0x4, scoped, tag = 'scoped memory for tpu_custom_call.1']
    %11 = vsyncpa [#allocation3], 0
    // Predicated region
    $region2: #{tpu_custom_call.1} parent=1 // pred_check
      _
    $region3: #{tpu_custom_call.1} parent=1 // pred_check_branch
      %13 = sbr.rel (0) target = $region5
    $region4: #{tpu_custom_call.1} parent=1 // pred_region
      _
    $region5: #{tpu_custom_call.1} parent=1 // pred_fallthru
      _
    // Predicated region
    $region6: #{tpu_custom_call.1} parent=1 // pred_check
      _
    $region7: #{tpu_custom_call.1} parent=1 // pred_check_branch
      %15 = sbr.rel (0) target = $region9
    $region8: #{tpu_custom_call.1} parent=1 // pred_region
      _
    $region9: #{tpu_custom_call.1} parent=1 // pred_fallthru
      _
    // Predicated region
    $region10: #{tpu_custom_call.1} parent=1 // pred_check
      _
    $region11: #{tpu_custom_call.1} parent=1 // pred_check_branch
      %17 = sbr.rel (0) target = $region13
    $region12: #{tpu_custom_call.1} parent=1 // pred_region
      _
    $region13: #{tpu_custom_call.1} parent=1 // pred_fallthru
      _
    // Predicated region
    $region14: #{tpu_custom_call.1} parent=1 // pred_check
      _
    $region15: #{tpu_custom_call.1} parent=1 // pred_check_branch
      %19 = sbr.rel (0) target = $region17
    $region16: #{tpu_custom_call.1} parent=1 // pred_region
      _
    $region17: #{tpu_custom_call.1} parent=1 // pred_fallthru
      _
    // Predicated region
    $region18: #{tpu_custom_call.1} parent=1 // pred_check
      _
    $region19: #{tpu_custom_call.1} parent=1 // pred_check_branch
      %21 = sbr.rel (0) target = $region21
    $region20: #{tpu_custom_call.1} parent=1 // pred_region
      _
    $region21: #{tpu_custom_call.1} parent=1 // pred_fallthru
      _
    // Predicated region
    $region22: #{tpu_custom_call.1} parent=1 // pred_check
      _
    $region23: #{tpu_custom_call.1} parent=1 // pred_check_branch
      %23 = sbr.rel (0) target = $region25
    $region24: #{tpu_custom_call.1} parent=1 // pred_region
      _
    $region25: #{tpu_custom_call.1} parent=1 // pred_fallthru
      _
    %v24 = vld [vmem:[%s0] sm:$0xff]
    %v25 = vld [vmem:[%s0 + $0x8] sm:$0xff]
    %v26 = vld [vmem:[%s0 + $0x10] sm:$0xff]
    %v27 = vld [vmem:[%s0 + $0x18] sm:$0xff]
    %v28 = vld [vmem:[%s0 + $0x20] sm:$0xff]
    %v29 = vld [vmem:[%s0 + $0x28] sm:$0xff]
    %v30 = vld [vmem:[%s0 + $0x30] sm:$0xff]
    %v31 = vld [vmem:[%s0 + $0x38] sm:$0xff]
    %v32 = vld [vmem:[%s0 + $0x40] sm:$0xff]
    %v33 = vld [vmem:[%s0 + $0x48] sm:$0xff]
    %v34 = vld [vmem:[%s0 + $0x50] sm:$0xff]
    %v35 = vld [vmem:[%s0 + $0x58] sm:$0xff]
    %v36 = vld [vmem:[%s0 + $0x60] sm:$0xff]
    %v37 = vld [vmem:[%s0 + $0x68] sm:$0xff]
    %v38 = vld [vmem:[%s0 + $0x70] sm:$0xff]
    %v39 = vld [vmem:[%s0 + $0x78] sm:$0xff]
    %v40 = vld [vmem:[%s0 + $0x80] sm:$0xff]
    %v41 = vld [vmem:[%s0 + $0x88] sm:$0xff]
    %v42 = vld [vmem:[%s0 + $0x90] sm:$0xff]
    %v43 = vld [vmem:[%s0 + $0x98] sm:$0xff]
    %v44 = vld [vmem:[%s0 + $0xa0] sm:$0xff]
    %v45 = vld [vmem:[%s0 + $0xa8] sm:$0xff]
    %v46 = vld [vmem:[%s0 + $0xb0] sm:$0xff]
    %v47 = vld [vmem:[%s0 + $0xb8] sm:$0xff]
    %v48 = vld [vmem:[%s0 + $0xc0] sm:$0xff]
    %v49 = vld [vmem:[%s0 + $0xc8] sm:$0xff]
    %v50 = vld [vmem:[%s0 + $0xd0] sm:$0xff]
    %v51 = vld [vmem:[%s0 + $0xd8] sm:$0xff]
    %v52 = vld [vmem:[%s0 + $0xe0] sm:$0xff]
    %v53 = vld [vmem:[%s0 + $0xe8] sm:$0xff]
    %v54 = vld [vmem:[%s0 + $0xf0] sm:$0xff]
    %v55 = vld [vmem:[%s0 + $0xf8] sm:$0xff]
    %v56 = vld [vmem:[%s0 + $0x100] sm:$0xff]
    %v57 = vld [vmem:[%s0 + $0x108] sm:$0xff]
    %v58 = vld [vmem:[%s0 + $0x110] sm:$0xff]
    %v59 = vld [vmem:[%s0 + $0x118] sm:$0xff]
    %v60 = vld [vmem:[%s0 + $0x120] sm:$0xff]
    %v61 = vld [vmem:[%s0 + $0x128] sm:$0xff]
    %v62 = vld [vmem:[%s0 + $0x130] sm:$0xff]
    %v63 = vld [vmem:[%s0 + $0x138] sm:$0xff]
    %v64 = vld [vmem:[%s0 + $0x140] sm:$0xff]
    %v65 = vld [vmem:[%s0 + $0x148] sm:$0xff]
    %v66 = vld [vmem:[%s0 + $0x150] sm:$0xff]
    %v67 = vld [vmem:[%s0 + $0x158] sm:$0xff]
    %v68 = vld [vmem:[%s0 + $0x160] sm:$0xff]
    %v69 = vld [vmem:[%s0 + $0x168] sm:$0xff]
    %v70 = vld [vmem:[%s0 + $0x170] sm:$0xff]
    %v71 = vld [vmem:[%s0 + $0x178] sm:$0xff]
    %v72 = vld [vmem:[%s1] sm:$0xff]
    %v73 = vld [vmem:[%s1 + $0x8] sm:$0xff]
    %v74 = vld [vmem:[%s1 + $0x10] sm:$0xff]
    %v75 = vld [vmem:[%s1 + $0x18] sm:$0xff]
    %v76 = vld [vmem:[%s1 + $0x20] sm:$0xff]
    %v77 = vld [vmem:[%s1 + $0x28] sm:$0xff]
    %v78 = vld [vmem:[%s1 + $0x30] sm:$0xff]
    %v79 = vld [vmem:[%s1 + $0x38] sm:$0xff]
    %v80 = vld [vmem:[%s1 + $0x40] sm:$0xff]
    %v81 = vld [vmem:[%s1 + $0x48] sm:$0xff]
    %v82 = vld [vmem:[%s1 + $0x50] sm:$0xff]
    %v83 = vld [vmem:[%s1 + $0x58] sm:$0xff]
    %v84 = vld [vmem:[%s1 + $0x60] sm:$0xff]
    %v85 = vld [vmem:[%s1 + $0x68] sm:$0xff]
    %v86 = vld [vmem:[%s1 + $0x70] sm:$0xff]
    %v87 = vld [vmem:[%s1 + $0x78] sm:$0xff]
    %v88 = vld [vmem:[%s1 + $0x80] sm:$0xff]
    %v89 = vld [vmem:[%s1 + $0x88] sm:$0xff]
    %v90 = vld [vmem:[%s1 + $0x90] sm:$0xff]
    %v91 = vld [vmem:[%s1 + $0x98] sm:$0xff]
    %v92 = vld [vmem:[%s1 + $0xa0] sm:$0xff]
    %v93 = vld [vmem:[%s1 + $0xa8] sm:$0xff]
    %v94 = vld [vmem:[%s1 + $0xb0] sm:$0xff]
    %v95 = vld [vmem:[%s1 + $0xb8] sm:$0xff]
    %v96 = vld [vmem:[%s1 + $0xc0] sm:$0xff]
    %v97 = vld [vmem:[%s1 + $0xc8] sm:$0xff]
    %v98 = vld [vmem:[%s1 + $0xd0] sm:$0xff]
    %v99 = vld [vmem:[%s1 + $0xd8] sm:$0xff]
    %v100 = vld [vmem:[%s1 + $0xe0] sm:$0xff]
    %v101 = vld [vmem:[%s1 + $0xe8] sm:$0xff]
    %v102 = vld [vmem:[%s1 + $0xf0] sm:$0xff]
    %v103 = vld [vmem:[%s1 + $0xf8] sm:$0xff]
    %v104 = vld [vmem:[%s1 + $0x100] sm:$0xff]
    %v105 = vld [vmem:[%s1 + $0x108] sm:$0xff]
    %v106 = vld [vmem:[%s1 + $0x110] sm:$0xff]
    %v107 = vld [vmem:[%s1 + $0x118] sm:$0xff]
    %v108 = vld [vmem:[%s1 + $0x120] sm:$0xff]
    %v109 = vld [vmem:[%s1 + $0x128] sm:$0xff]
    %v110 = vld [vmem:[%s1 + $0x130] sm:$0xff]
    %v111 = vld [vmem:[%s1 + $0x138] sm:$0xff]
    %v112 = vld [vmem:[%s1 + $0x140] sm:$0xff]
    %v113 = vld [vmem:[%s1 + $0x148] sm:$0xff]
    %v114 = vld [vmem:[%s1 + $0x150] sm:$0xff]
    %v115 = vld [vmem:[%s1 + $0x158] sm:$0xff]
    %v116 = vld [vmem:[%s1 + $0x160] sm:$0xff]
    %v117 = vld [vmem:[%s1 + $0x168] sm:$0xff]
    %v118 = vld [vmem:[%s1 + $0x170] sm:$0xff]
    %v119 = vld [vmem:[%s1 + $0x178] sm:$0xff]
    %v120 = vld [vmem:[%s1 + $0x180] sm:$0xff]
    %v121 = vld [vmem:[%s1 + $0x188] sm:$0xff]
    %v122 = vld [vmem:[%s1 + $0x190] sm:$0xff]
    %v123 = vld [vmem:[%s1 + $0x198] sm:$0xff]
    %v124 = vld [vmem:[%s1 + $0x1a0] sm:$0xff]
    %v125 = vld [vmem:[%s1 + $0x1a8] sm:$0xff]
    %v126 = vld [vmem:[%s1 + $0x1b0] sm:$0xff]
    %v127 = vld [vmem:[%s1 + $0x1b8] sm:$0xff]
    %v128 = vld [vmem:[%s1 + $0x1c0] sm:$0xff]
    %v129 = vld [vmem:[%s1 + $0x1c8] sm:$0xff]
    %v130 = vld [vmem:[%s1 + $0x1d0] sm:$0xff]
    %v131 = vld [vmem:[%s1 + $0x1d8] sm:$0xff]
    %v132 = vld [vmem:[%s1 + $0x1e0] sm:$0xff]
    %v133 = vld [vmem:[%s1 + $0x1e8] sm:$0xff]
    %v134 = vld [vmem:[%s1 + $0x1f0] sm:$0xff]
    %v135 = vld [vmem:[%s1 + $0x1f8] sm:$0xff]
    %v136 = vld [vmem:[%s1 + $0x200] sm:$0xff]
    %v137 = vld [vmem:[%s1 + $0x208] sm:$0xff]
    %v138 = vld [vmem:[%s1 + $0x210] sm:$0xff]
    %v139 = vld [vmem:[%s1 + $0x218] sm:$0xff]
    %v140 = vld [vmem:[%s1 + $0x220] sm:$0xff]
    %v141 = vld [vmem:[%s1 + $0x228] sm:$0xff]
    %v142 = vld [vmem:[%s1 + $0x230] sm:$0xff]
    %v143 = vld [vmem:[%s1 + $0x238] sm:$0xff]
    %v144 = vld [vmem:[%s1 + $0x240] sm:$0xff]
    %v145 = vld [vmem:[%s1 + $0x248] sm:$0xff]
    %v146 = vld [vmem:[%s1 + $0x250] sm:$0xf]
    %v147 = vld [vmem:[%s1 + $0x258] sm:$0xf]
    %v148 = vld [vmem:[%s2] sm:$0x3]
    %v150 = vlaneseq
    %v151 = vshrl.u32 %v150, 7
    %v152 = vsub.s32 0, %v151
    %v153 = vrot.slane %v148, %v152
    %v154 = vlaneseq
    %v155 = vshrl.u32 %v154, 7
    %v156 = vsub.s32 1, %v155
    %v157 = vrot.slane %v148, %v156
    %vm160 = vcmask 359424
    %v162 = vsel %vm160, %v26, 0
    %v165 = vsel %vm160, %v29, 0
    %v168 = vsel %vm160, %v32, 0
    %v171 = vsel %vm160, %v35, 0
    %v174 = vsel %vm160, %v38, 0
    %v177 = vsel %vm160, %v41, 0
    %v180 = vsel %vm160, %v44, 0
    %v183 = vsel %vm160, %v47, 0
    %v186 = vsel %vm160, %v50, 0
    %v189 = vsel %vm160, %v53, 0
    %v192 = vsel %vm160, %v56, 0
    %v195 = vsel %vm160, %v59, 0
    %v198 = vsel %vm160, %v62, 0
    %v201 = vsel %vm160, %v65, 0
    %v204 = vsel %vm160, %v68, 0
    %v207 = vsel %vm160, %v71, 0
    %vm209 = vcmask 1043456
    %v211 = vsel %vm209, %v146, 0
    %v214 = vsel %vm209, %v147, 0
    %216 = vmatprep.subr.mxu0 %v73
    %217 = vmatpush1.msra.mxu0 %v72
    %218 = vmatprep.subr.mxu0 %v75
    %219 = vmatpush1.msra.mxu0 %v74
    %220 = vmatprep.subr.mxu0 %v77
    %221 = vmatpush1.msra.mxu0 %v76
    %222 = vmatprep.subr.mxu0 %v79
    %223 = vmatpush1.msra.mxu0 %v78
    %224 = vmatprep.subr.mxu0 %v81
    %225 = vmatpush1.msra.mxu0 %v80
    %226 = vmatprep.subr.mxu0 %v83
    %227 = vmatpush1.msra.mxu0 %v82
    %228 = vmatprep.subr.mxu0 %v85
    %229 = vmatpush1.msra.mxu0 %v84
    %230 = vmatprep.subr.mxu0 %v87
    %231 = vmatpush1.msra.mxu0 %v86
    %232 = vmatprep.subr.mxu0 %v89
    %233 = vmatpush1.msra.mxu0 %v88
    %234 = vmatprep.subr.mxu0 %v91
    %235 = vmatpush1.msra.mxu0 %v90
    %236 = vmatprep.subr.mxu0 %v93
    %237 = vmatpush1.msra.mxu0 %v92
    %238 = vmatprep.subr.mxu0 %v95
    %239 = vmatpush1.msra.mxu0 %v94
    %240 = vmatprep.subr.mxu0 %v97
    %241 = vmatpush1.msra.mxu0 %v96
    %242 = vmatprep.subr.mxu0 %v99
    %243 = vmatpush1.msra.mxu0 %v98
    %244 = vmatprep.subr.mxu0 %v101
    %245 = vmatpush1.msra.mxu0 %v100
    %246 = vmatprep.subr.mxu0 %v103
    %247 = vmatpush1.msra.mxu0 %v102
    %248 = vmatprep.subr.mxu0 %v105
    %249 = vmatpush1.msra.mxu0 %v104
    %250 = vmatprep.subr.mxu0 %v107
    %251 = vmatpush1.msra.mxu0 %v106
    %252 = vmatprep.subr.mxu0 %v109
    %253 = vmatpush1.msra.mxu0 %v108
    %254 = vmatprep.subr.mxu0 %v111
    %255 = vmatpush1.msra.mxu0 %v110
    %256 = vmatprep.subr.mxu0 %v113
    %257 = vmatpush1.msra.mxu0 %v112
    %258 = vmatprep.subr.mxu0 %v115
    %259 = vmatpush1.msra.mxu0 %v114
    %260 = vmatprep.subr.mxu0 %v117
    %261 = vmatpush1.msra.mxu0 %v116
    %262 = vmatprep.subr.mxu0 %v119
    %263 = vmatpush1.msra.mxu0 %v118
    %264 = vmatprep.subr.mxu0 %v121
    %265 = vmatpush1.msra.mxu0 %v120
    %266 = vmatprep.subr.mxu0 %v123
    %267 = vmatpush1.msra.mxu0 %v122
    %268 = vmatprep.subr.mxu0 %v125
    %269 = vmatpush1.msra.mxu0 %v124
    %270 = vmatprep.subr.mxu0 %v127
    %271 = vmatpush1.msra.mxu0 %v126
    %272 = vmatprep.subr.mxu0 %v129
    %273 = vmatpush1.msra.mxu0 %v128
    %274 = vmatprep.subr.mxu0 %v131
    %275 = vmatpush1.msra.mxu0 %v130
    %276 = vmatprep.subr.mxu0 %v133
    %277 = vmatpush1.msra.mxu0 %v132
    %278 = vmatprep.subr.mxu0 %v135
    %279 = vmatpush1.msra.mxu0 %v134
    %280 = vmatprep.mubr.f32.mxu0 %v25
    %281 = vmatmul.mubr.f32.gmra.mrb[0].mxu0 %v24
    %v282 = vpop.f32.mrb[0].mxu0
    %v283 = vadd.f32 %v153, %v282
    %v284 = vpop.f32.mrb[0].mxu0
    %v285 = vadd.f32 %v157, %v284
    %286 = vmatprep.mubr.f32.mxu0 %v28
    %287 = vmatmul.mubr.f32.gmra.mrb[0].mxu0 %v27
    %v288 = vpop.f32.mrb[0].mxu0
    %v289 = vadd.f32 %v153, %v288
    %v290 = vpop.f32.mrb[0].mxu0
    %v291 = vadd.f32 %v157, %v290
    %292 = vmatprep.mubr.f32.mxu0 %v31
    %293 = vmatmul.mubr.f32.gmra.mrb[0].mxu0 %v30
    %v294 = vpop.f32.mrb[0].mxu0
    %v295 = vadd.f32 %v153, %v294
    %v296 = vpop.f32.mrb[0].mxu0
    %v297 = vadd.f32 %v157, %v296
    %298 = vmatprep.mubr.f32.mxu0 %v34
    %299 = vmatmul.mubr.f32.gmra.mrb[0].mxu0 %v33
    %v300 = vpop.f32.mrb[0].mxu0
    %v301 = vadd.f32 %v153, %v300
    %v302 = vpop.f32.mrb[0].mxu0
    %v303 = vadd.f32 %v157, %v302
    %304 = vmatprep.mubr.f32.mxu0 %v37
    %305 = vmatmul.mubr.f32.gmra.mrb[0].mxu0 %v36
    %v306 = vpop.f32.mrb[0].mxu0
    %v307 = vadd.f32 %v153, %v306
    %v308 = vpop.f32.mrb[0].mxu0
    %v309 = vadd.f32 %v157, %v308
    %310 = vmatprep.mubr.f32.mxu0 %v40
    %311 = vmatmul.mubr.f32.gmra.mrb[0].mxu0 %v39
    %v312 = vpop.f32.mrb[0].mxu0
    %v313 = vadd.f32 %v153, %v312
    %v314 = vpop.f32.mrb[0].mxu0
    %v315 = vadd.f32 %v157, %v314
    %316 = vmatprep.mubr.f32.mxu0 %v43
    %317 = vmatmul.mubr.f32.gmra.mrb[0].mxu0 %v42
    %v318 = vpop.f32.mrb[0].mxu0
    %v319 = vadd.f32 %v153, %v318
    %v320 = vpop.f32.mrb[0].mxu0
    %v321 = vadd.f32 %v157, %v320
    %322 = vmatprep.mubr.f32.mxu0 %v46
    %323 = vmatmul.mubr.f32.gmra.mrb[0].mxu0 %v45
    %v324 = vpop.f32.mrb[0].mxu0
    %v325 = vadd.f32 %v153, %v324
    %v326 = vpop.f32.mrb[0].mxu0
    %v327 = vadd.f32 %v157, %v326
    %328 = vmatprep.mubr.f32.mxu0 %v49
    %329 = vmatmul.mubr.f32.gmra.mrb[0].mxu0 %v48
    %v330 = vpop.f32.mrb[0].mxu0
    %v331 = vadd.f32 %v153, %v330
    %v332 = vpop.f32.mrb[0].mxu0
    %v333 = vadd.f32 %v157, %v332
    %334 = vmatprep.mubr.f32.mxu0 %v52
    %335 = vmatmul.mubr.f32.gmra.mrb[0].mxu0 %v51
    %v336 = vpop.f32.mrb[0].mxu0
    %v337 = vadd.f32 %v153, %v336
    %v338 = vpop.f32.mrb[0].mxu0
    %v339 = vadd.f32 %v157, %v338
    %340 = vmatprep.mubr.f32.mxu0 %v55
    %341 = vmatmul.mubr.f32.gmra.mrb[0].mxu0 %v54
    %v342 = vpop.f32.mrb[0].mxu0
    %v343 = vadd.f32 %v153, %v342
    %v344 = vpop.f32.mrb[0].mxu0
    %v345 = vadd.f32 %v157, %v344
    %346 = vmatprep.mubr.f32.mxu0 %v58
    %347 = vmatmul.mubr.f32.gmra.mrb[0].mxu0 %v57
    %v348 = vpop.f32.mrb[0].mxu0
    %v349 = vadd.f32 %v153, %v348
    %v350 = vpop.f32.mrb[0].mxu0
    %v351 = vadd.f32 %v157, %v350
    %352 = vmatprep.mubr.f32.mxu0 %v61
    %353 = vmatmul.mubr.f32.gmra.mrb[0].mxu0 %v60
    %v354 = vpop.f32.mrb[0].mxu0
    %v355 = vadd.f32 %v153, %v354
    %v356 = vpop.f32.mrb[0].mxu0
    %v357 = vadd.f32 %v157, %v356
    %358 = vmatprep.mubr.f32.mxu0 %v64
    %359 = vmatmul.mubr.f32.gmra.mrb[0].mxu0 %v63
    %v360 = vpop.f32.mrb[0].mxu0
    %v361 = vadd.f32 %v153, %v360
    %v362 = vpop.f32.mrb[0].mxu0
    %v363 = vadd.f32 %v157, %v362
    %364 = vmatprep.mubr.f32.mxu0 %v67
    %365 = vmatmul.mubr.f32.gmra.mrb[0].mxu0 %v66
    %v366 = vpop.f32.mrb[0].mxu0
    %v367 = vadd.f32 %v153, %v366
    %v368 = vpop.f32.mrb[0].mxu0
    %v369 = vadd.f32 %v157, %v368
    %370 = vmatprep.mubr.f32.mxu0 %v70
    %371 = vmatmul.mubr.f32.gmra.mrb[0].mxu0 %v69
    %v372 = vpop.f32.mrb[0].mxu0
    %v373 = vadd.f32 %v153, %v372
    %v374 = vpop.f32.mrb[0].mxu0
    %v375 = vadd.f32 %v157, %v374
    %376 = vdwg.mxu0
    %377 = vmatprep.subr.mxu0 %v137
    %378 = vmatpush1.msra.mxu0 %v136
    %379 = vmatprep.subr.mxu0 %v139
    %380 = vmatpush1.msra.mxu0 %v138
    %381 = vmatprep.subr.mxu0 %v141
    %382 = vmatpush1.msra.mxu0 %v140
    %383 = vmatprep.subr.mxu0 %v143
    %384 = vmatpush1.msra.mxu0 %v142
    %385 = vmatprep.subr.mxu0 %v145
    %386 = vmatpush1.msra.mxu0 %v144
    %387 = vmatprep.subr.mxu0 %v214
    %388 = vmatpush1.msra.mxu0 %v211
    %389 = vmatprep.subr.mxu0 0.0
    %390 = vmatpush1.msra.mxu0 0.0
    %391 = vmatprep.subr.mxu0 0.0
    %392 = vmatpush1.msra.mxu0 0.0
    %393 = vmatprep.subr.mxu0 0.0
    %394 = vmatpush1.msra.mxu0 0.0
    %395 = vmatprep.subr.mxu0 0.0
    %396 = vmatpush1.msra.mxu0 0.0
    %397 = vmatprep.subr.mxu0 0.0
    %398 = vmatpush1.msra.mxu0 0.0
    %399 = vmatprep.subr.mxu0 0.0
    %400 = vmatpush1.msra.mxu0 0.0
    %401 = vmatprep.subr.mxu0 0.0
    %402 = vmatpush1.msra.mxu0 0.0
    %403 = vmatprep.subr.mxu0 0.0
    %404 = vmatpush1.msra.mxu0 0.0
    %405 = vmatprep.subr.mxu0 0.0
    %406 = vmatpush1.msra.mxu0 0.0
    %407 = vmatprep.subr.mxu0 0.0
    %408 = vmatpush1.msra.mxu0 0.0
    %409 = vmatprep.subr.mxu0 0.0
    %410 = vmatpush1.msra.mxu0 0.0
    %411 = vmatprep.subr.mxu0 0.0
    %412 = vmatpush1.msra.mxu0 0.0
    %413 = vmatprep.subr.mxu0 0.0
    %414 = vmatpush1.msra.mxu0 0.0
    %415 = vmatprep.subr.mxu0 0.0
    %416 = vmatpush1.msra.mxu0 0.0
    %417 = vmatprep.subr.mxu0 0.0
    %418 = vmatpush1.msra.mxu0 0.0
    %419 = vmatprep.subr.mxu0 0.0
    %420 = vmatpush1.msra.mxu0 0.0
    %421 = vmatprep.subr.mxu0 0.0
    %422 = vmatpush1.msra.mxu0 0.0
    %423 = vmatprep.subr.mxu0 0.0
    %424 = vmatpush1.msra.mxu0 0.0
    %425 = vmatprep.subr.mxu0 0.0
    %426 = vmatpush1.msra.mxu0 0.0
    %427 = vmatprep.subr.mxu0 0.0
    %428 = vmatpush1.msra.mxu0 0.0
    %429 = vmatprep.subr.mxu0 0.0
    %430 = vmatpush1.msra.mxu0 0.0
    %431 = vmatprep.subr.mxu0 0.0
    %432 = vmatpush1.msra.mxu0 0.0
    %433 = vmatprep.subr.mxu0 0.0
    %434 = vmatpush1.msra.mxu0 0.0
    %435 = vmatprep.subr.mxu0 0.0
    %436 = vmatpush1.msra.mxu0 0.0
    %437 = vmatprep.subr.mxu0 0.0
    %438 = vmatpush1.msra.mxu0 0.0
    %439 = vmatprep.subr.mxu0 0.0
    %440 = vmatpush1.msra.mxu0 0.0
    %441 = vmatprep.mubr.f32.mxu0 0.0
    %442 = vmatmul.mubr.f32.gmra.mrb[0].mxu0 %v162
    %v443 = vpop.f32.mrb[0].mxu0
    %v444 = vadd.f32 %v283, %v443
    %v445 = vpop.f32.mrb[0].mxu0
    %v446 = vadd.f32 %v285, %v445
    %447 = vmatprep.mubr.f32.mxu0 0.0
    %448 = vmatmul.mubr.f32.gmra.mrb[0].mxu0 %v165
    %v449 = vpop.f32.mrb[0].mxu0
    %v450 = vadd.f32 %v289, %v449
    %v451 = vpop.f32.mrb[0].mxu0
    %v452 = vadd.f32 %v291, %v451
    %453 = vmatprep.mubr.f32.mxu0 0.0
    %454 = vmatmul.mubr.f32.gmra.mrb[0].mxu0 %v168
    %v455 = vpop.f32.mrb[0].mxu0
    %v456 = vadd.f32 %v295, %v455
    %v457 = vpop.f32.mrb[0].mxu0
    %v458 = vadd.f32 %v297, %v457
    %459 = vmatprep.mubr.f32.mxu0 0.0
    %460 = vmatmul.mubr.f32.gmra.mrb[0].mxu0 %v171
    %v461 = vpop.f32.mrb[0].mxu0
    %v462 = vadd.f32 %v301, %v461
    %v463 = vpop.f32.mrb[0].mxu0
    %v464 = vadd.f32 %v303, %v463
    %465 = vmatprep.mubr.f32.mxu0 0.0
    %466 = vmatmul.mubr.f32.gmra.mrb[0].mxu0 %v174
    %v467 = vpop.f32.mrb[0].mxu0
    %v468 = vadd.f32 %v307, %v467
    %v469 = vpop.f32.mrb[0].mxu0
    %v470 = vadd.f32 %v309, %v469
    %471 = vmatprep.mubr.f32.mxu0 0.0
    %472 = vmatmul.mubr.f32.gmra.mrb[0].mxu0 %v177
    %v473 = vpop.f32.mrb[0].mxu0
    %v474 = vadd.f32 %v313, %v473
    %v475 = vpop.f32.mrb[0].mxu0
    %v476 = vadd.f32 %v315, %v475
    %477 = vmatprep.mubr.f32.mxu0 0.0
    %478 = vmatmul.mubr.f32.gmra.mrb[0].mxu0 %v180
    %v479 = vpop.f32.mrb[0].mxu0
    %v480 = vadd.f32 %v319, %v479
    %v481 = vpop.f32.mrb[0].mxu0
    %v482 = vadd.f32 %v321, %v481
    %483 = vmatprep.mubr.f32.mxu0 0.0
    %484 = vmatmul.mubr.f32.gmra.mrb[0].mxu0 %v183
    %v485 = vpop.f32.mrb[0].mxu0
    %v486 = vadd.f32 %v325, %v485
    %v487 = vpop.f32.mrb[0].mxu0
    %v488 = vadd.f32 %v327, %v487
    %489 = vmatprep.mubr.f32.mxu0 0.0
    %490 = vmatmul.mubr.f32.gmra.mrb[0].mxu0 %v186
    %v491 = vpop.f32.mrb[0].mxu0
    %v492 = vadd.f32 %v331, %v491
    %v493 = vpop.f32.mrb[0].mxu0
    %v494 = vadd.f32 %v333, %v493
    %495 = vmatprep.mubr.f32.mxu0 0.0
    %496 = vmatmul.mubr.f32.gmra.mrb[0].mxu0 %v189
    %v497 = vpop.f32.mrb[0].mxu0
    %v498 = vadd.f32 %v337, %v497
    %v499 = vpop.f32.mrb[0].mxu0
    %v500 = vadd.f32 %v339, %v499
    %501 = vmatprep.mubr.f32.mxu0 0.0
    %502 = vmatmul.mubr.f32.gmra.mrb[0].mxu0 %v192
    %v503 = vpop.f32.mrb[0].mxu0
    %v504 = vadd.f32 %v343, %v503
    %v505 = vpop.f32.mrb[0].mxu0
    %v506 = vadd.f32 %v345, %v505
    %507 = vmatprep.mubr.f32.mxu0 0.0
    %508 = vmatmul.mubr.f32.gmra.mrb[0].mxu0 %v195
    %v509 = vpop.f32.mrb[0].mxu0
    %v510 = vadd.f32 %v349, %v509
    %v511 = vpop.f32.mrb[0].mxu0
    %v512 = vadd.f32 %v351, %v511
    %513 = vmatprep.mubr.f32.mxu0 0.0
    %514 = vmatmul.mubr.f32.gmra.mrb[0].mxu0 %v198
    %v515 = vpop.f32.mrb[0].mxu0
    %v516 = vadd.f32 %v355, %v515
    %v517 = vpop.f32.mrb[0].mxu0
    %v518 = vadd.f32 %v357, %v517
    %519 = vmatprep.mubr.f32.mxu0 0.0
    %520 = vmatmul.mubr.f32.gmra.mrb[0].mxu0 %v201
    %v521 = vpop.f32.mrb[0].mxu0
    %v522 = vadd.f32 %v361, %v521
    %v523 = vpop.f32.mrb[0].mxu0
    %v524 = vadd.f32 %v363, %v523
    %525 = vmatprep.mubr.f32.mxu0 0.0
    %526 = vmatmul.mubr.f32.gmra.mrb[0].mxu0 %v204
    %v527 = vpop.f32.mrb[0].mxu0
    %v528 = vadd.f32 %v367, %v527
    %v529 = vpop.f32.mrb[0].mxu0
    %v530 = vadd.f32 %v369, %v529
    %531 = vmatprep.mubr.f32.mxu0 0.0
    %532 = vmatmul.mubr.f32.gmra.mrb[0].mxu0 %v207
    %v533 = vpop.f32.mrb[0].mxu0
    %v534 = vadd.f32 %v373, %v533
    %v535 = vpop.f32.mrb[0].mxu0
    %v536 = vadd.f32 %v375, %v535
    %537 = vdwg.mxu0
    %v538 = vmax.f32 %v444, 0.0
    %v539 = vmax.f32 %v446, 0.0
    %v540 = vmax.f32 %v450, 0.0
    %v541 = vmax.f32 %v452, 0.0
    %v542 = vmax.f32 %v456, 0.0
    %v543 = vmax.f32 %v458, 0.0
    %v544 = vmax.f32 %v462, 0.0
    %v545 = vmax.f32 %v464, 0.0
    %v546 = vmax.f32 %v468, 0.0
    %v547 = vmax.f32 %v470, 0.0
    %v548 = vmax.f32 %v474, 0.0
    %v549 = vmax.f32 %v476, 0.0
    %v550 = vmax.f32 %v480, 0.0
    %v551 = vmax.f32 %v482, 0.0
    %v552 = vmax.f32 %v486, 0.0
    %v553 = vmax.f32 %v488, 0.0
    %v554 = vmax.f32 %v492, 0.0
    %v555 = vmax.f32 %v494, 0.0
    %v556 = vmax.f32 %v498, 0.0
    %v557 = vmax.f32 %v500, 0.0
    %v558 = vmax.f32 %v504, 0.0
    %v559 = vmax.f32 %v506, 0.0
    %v560 = vmax.f32 %v510, 0.0
    %v561 = vmax.f32 %v512, 0.0
    %v562 = vmax.f32 %v516, 0.0
    %v563 = vmax.f32 %v518, 0.0
    %v564 = vmax.f32 %v522, 0.0
    %v565 = vmax.f32 %v524, 0.0
    %v566 = vmax.f32 %v528, 0.0
    %v567 = vmax.f32 %v530, 0.0
    %v568 = vmax.f32 %v534, 0.0
    %v569 = vmax.f32 %v536, 0.0
    %v570 = vld [vmem:[%s3] sm:$0xff]
    %v571 = vld [vmem:[%s3 + $0x8] sm:$0xff]
    %v572 = vld [vmem:[%s3 + $0x10] sm:$0xff]
    %v573 = vld [vmem:[%s3 + $0x18] sm:$0xff]
    %v574 = vld [vmem:[%s3 + $0x20] sm:$0xff]
    %v575 = vld [vmem:[%s3 + $0x28] sm:$0xff]
    %v576 = vld [vmem:[%s3 + $0x30] sm:$0xff]
    %v577 = vld [vmem:[%s3 + $0x38] sm:$0xff]
    %v578 = vld [vmem:[%s3 + $0x40] sm:$0xff]
    %v579 = vld [vmem:[%s3 + $0x48] sm:$0xff]
    %v580 = vld [vmem:[%s3 + $0x50] sm:$0xff]
    %v581 = vld [vmem:[%s3 + $0x58] sm:$0xff]
    %v582 = vld [vmem:[%s3 + $0x60] sm:$0xff]
    %v583 = vld [vmem:[%s3 + $0x68] sm:$0xff]
    %v584 = vld [vmem:[%s3 + $0x70] sm:$0xff]
    %v585 = vld [vmem:[%s3 + $0x78] sm:$0xff]
    %v586 = vld [vmem:[%s3 + $0x80] sm:$0xff]
    %v587 = vld [vmem:[%s3 + $0x88] sm:$0xff]
    %v588 = vld [vmem:[%s3 + $0x90] sm:$0xff]
    %v589 = vld [vmem:[%s3 + $0x98] sm:$0xff]
    %v590 = vld [vmem:[%s3 + $0xa0] sm:$0xff]
    %v591 = vld [vmem:[%s3 + $0xa8] sm:$0xff]
    %v592 = vld [vmem:[%s3 + $0xb0] sm:$0xff]
    %v593 = vld [vmem:[%s3 + $0xb8] sm:$0xff]
    %v594 = vld [vmem:[%s3 + $0xc0] sm:$0xff]
    %v595 = vld [vmem:[%s3 + $0xc8] sm:$0xff]
    %v596 = vld [vmem:[%s3 + $0xd0] sm:$0xff]
    %v597 = vld [vmem:[%s3 + $0xd8] sm:$0xff]
    %v598 = vld [vmem:[%s3 + $0xe0] sm:$0xff]
    %v599 = vld [vmem:[%s3 + $0xe8] sm:$0xff]
    %v600 = vld [vmem:[%s3 + $0xf0] sm:$0xff]
    %v601 = vld [vmem:[%s3 + $0xf8] sm:$0xff]
    %v602 = vld [vmem:[%s3 + $0x100] sm:$0xff]
    %v603 = vld [vmem:[%s3 + $0x108] sm:$0xff]
    %v604 = vld [vmem:[%s3 + $0x110] sm:$0xff]
    %v605 = vld [vmem:[%s3 + $0x118] sm:$0xff]
    %v606 = vld [vmem:[%s3 + $0x120] sm:$0x3f]
    %v607 = vld [vmem:[%s3 + $0x128] sm:$0x3f]
    %v608 = vld [vmem:[%s4] sm:$0x3]
    %v610 = vlaneseq
    %v611 = vshrl.u32 %v610, 7
    %v612 = vsub.s32 0, %v611
    %v613 = vrot.slane %v608, %v612
    %v614 = vlaneseq
    %v615 = vshrl.u32 %v614, 7
    %v616 = vsub.s32 1, %v615
    %v617 = vrot.slane %v608, %v616
    %vm620 = vcmask 179200
    %v622 = vsel %vm620, %v539, 0
    %v625 = vsel %vm620, %v541, 0
    %v628 = vsel %vm620, %v543, 0
    %v631 = vsel %vm620, %v545, 0
    %v634 = vsel %vm620, %v547, 0
    %v637 = vsel %vm620, %v549, 0
    %v640 = vsel %vm620, %v551, 0
    %v643 = vsel %vm620, %v553, 0
    %v646 = vsel %vm620, %v555, 0
    %v649 = vsel %vm620, %v557, 0
    %v652 = vsel %vm620, %v559, 0
    %v655 = vsel %vm620, %v561, 0
    %v658 = vsel %vm620, %v563, 0
    %v661 = vsel %vm620, %v565, 0
    %v664 = vsel %vm620, %v567, 0
    %v667 = vsel %vm620, %v569, 0
    %vm669 = vcmask 1045504
    %v671 = vsel %vm669, %v606, 0
    %v674 = vsel %vm669, %v607, 0
    %676 = vmatprep.subr.mxu0 %v571
    %677 = vmatpush1.msra.mxu0 %v570
    %678 = vmatprep.subr.mxu0 %v573
    %679 = vmatpush1.msra.mxu0 %v572
    %680 = vmatprep.subr.mxu0 %v575
    %681 = vmatpush1.msra.mxu0 %v574
    %682 = vmatprep.subr.mxu0 %v577
    %683 = vmatpush1.msra.mxu0 %v576
    %684 = vmatprep.subr.mxu0 %v579
    %685 = vmatpush1.msra.mxu0 %v578
    %686 = vmatprep.subr.mxu0 %v581
    %687 = vmatpush1.msra.mxu0 %v580
    %688 = vmatprep.subr.mxu0 %v583
    %689 = vmatpush1.msra.mxu0 %v582
    %690 = vmatprep.subr.mxu0 %v585
    %691 = vmatpush1.msra.mxu0 %v584
    %692 = vmatprep.subr.mxu0 %v587
    %693 = vmatpush1.msra.mxu0 %v586
    %694 = vmatprep.subr.mxu0 %v589
    %695 = vmatpush1.msra.mxu0 %v588
    %696 = vmatprep.subr.mxu0 %v591
    %697 = vmatpush1.msra.mxu0 %v590
    %698 = vmatprep.subr.mxu0 %v593
    %699 = vmatpush1.msra.mxu0 %v592
    %700 = vmatprep.subr.mxu0 %v595
    %701 = vmatpush1.msra.mxu0 %v594
    %702 = vmatprep.subr.mxu0 %v597
    %703 = vmatpush1.msra.mxu0 %v596
    %704 = vmatprep.subr.mxu0 %v599
    %705 = vmatpush1.msra.mxu0 %v598
    %706 = vmatprep.subr.mxu0 %v601
    %707 = vmatpush1.msra.mxu0 %v600
    %708 = vmatprep.subr.mxu0 %v603
    %709 = vmatpush1.msra.mxu0 %v602
    %710 = vmatprep.subr.mxu0 %v605
    %711 = vmatpush1.msra.mxu0 %v604
    %712 = vmatprep.subr.mxu0 %v674
    %713 = vmatpush1.msra.mxu0 %v671
    %714 = vmatprep.subr.mxu0 0.0
    %715 = vmatpush1.msra.mxu0 0.0
    %716 = vmatprep.subr.mxu0 0.0
    %717 = vmatpush1.msra.mxu0 0.0
    %718 = vmatprep.subr.mxu0 0.0
    %719 = vmatpush1.msra.mxu0 0.0
    %720 = vmatprep.subr.mxu0 0.0
    %721 = vmatpush1.msra.mxu0 0.0
    %722 = vmatprep.subr.mxu0 0.0
    %723 = vmatpush1.msra.mxu0 0.0
    %724 = vmatprep.subr.mxu0 0.0
    %725 = vmatpush1.msra.mxu0 0.0
    %726 = vmatprep.subr.mxu0 0.0
    %727 = vmatpush1.msra.mxu0 0.0
    %728 = vmatprep.subr.mxu0 0.0
    %729 = vmatpush1.msra.mxu0 0.0
    %730 = vmatprep.subr.mxu0 0.0
    %731 = vmatpush1.msra.mxu0 0.0
    %732 = vmatprep.subr.mxu0 0.0
    %733 = vmatpush1.msra.mxu0 0.0
    %734 = vmatprep.subr.mxu0 0.0
    %735 = vmatpush1.msra.mxu0 0.0
    %736 = vmatprep.subr.mxu0 0.0
    %737 = vmatpush1.msra.mxu0 0.0
    %738 = vmatprep.subr.mxu0 0.0
    %739 = vmatpush1.msra.mxu0 0.0
    %740 = vmatprep.mubr.f32.mxu0 %v622
    %741 = vmatmul.mubr.f32.gmra.mrb[0].mxu0 %v538
    %v742 = vpop.f32.mrb[0].mxu0
    %v743 = vadd.f32 %v613, %v742
    %v744 = vpop.f32.mrb[0].mxu0
    %v745 = vadd.f32 %v617, %v744
    %746 = vmatprep.mubr.f32.mxu0 %v625
    %747 = vmatmul.mubr.f32.gmra.mrb[0].mxu0 %v540
    %v748 = vpop.f32.mrb[0].mxu0
    %v749 = vadd.f32 %v613, %v748
    %v750 = vpop.f32.mrb[0].mxu0
    %v751 = vadd.f32 %v617, %v750
    %752 = vmatprep.mubr.f32.mxu0 %v628
    %753 = vmatmul.mubr.f32.gmra.mrb[0].mxu0 %v542
    %v754 = vpop.f32.mrb[0].mxu0
    %v755 = vadd.f32 %v613, %v754
    %v756 = vpop.f32.mrb[0].mxu0
    %v757 = vadd.f32 %v617, %v756
    %758 = vmatprep.mubr.f32.mxu0 %v631
    %759 = vmatmul.mubr.f32.gmra.mrb[0].mxu0 %v544
    %v760 = vpop.f32.mrb[0].mxu0
    %v761 = vadd.f32 %v613, %v760
    %v762 = vpop.f32.mrb[0].mxu0
    %v763 = vadd.f32 %v617, %v762
    %764 = vmatprep.mubr.f32.mxu0 %v634
    %765 = vmatmul.mubr.f32.gmra.mrb[0].mxu0 %v546
    %v766 = vpop.f32.mrb[0].mxu0
    %v767 = vadd.f32 %v613, %v766
    %v768 = vpop.f32.mrb[0].mxu0
    %v769 = vadd.f32 %v617, %v768
    %770 = vmatprep.mubr.f32.mxu0 %v637
    %771 = vmatmul.mubr.f32.gmra.mrb[0].mxu0 %v548
    %v772 = vpop.f32.mrb[0].mxu0
    %v773 = vadd.f32 %v613, %v772
    %v774 = vpop.f32.mrb[0].mxu0
    %v775 = vadd.f32 %v617, %v774
    %776 = vmatprep.mubr.f32.mxu0 %v640
    %777 = vmatmul.mubr.f32.gmra.mrb[0].mxu0 %v550
    %v778 = vpop.f32.mrb[0].mxu0
    %v779 = vadd.f32 %v613, %v778
    %v780 = vpop.f32.mrb[0].mxu0
    %v781 = vadd.f32 %v617, %v780
    %782 = vmatprep.mubr.f32.mxu0 %v643
    %783 = vmatmul.mubr.f32.gmra.mrb[0].mxu0 %v552
    %v784 = vpop.f32.mrb[0].mxu0
    %v785 = vadd.f32 %v613, %v784
    %v786 = vpop.f32.mrb[0].mxu0
    %v787 = vadd.f32 %v617, %v786
    %788 = vmatprep.mubr.f32.mxu0 %v646
    %789 = vmatmul.mubr.f32.gmra.mrb[0].mxu0 %v554
    %v790 = vpop.f32.mrb[0].mxu0
    %v791 = vadd.f32 %v613, %v790
    %v792 = vpop.f32.mrb[0].mxu0
    %v793 = vadd.f32 %v617, %v792
    %794 = vmatprep.mubr.f32.mxu0 %v649
    %795 = vmatmul.mubr.f32.gmra.mrb[0].mxu0 %v556
    %v796 = vpop.f32.mrb[0].mxu0
    %v797 = vadd.f32 %v613, %v796
    %v798 = vpop.f32.mrb[0].mxu0
    %v799 = vadd.f32 %v617, %v798
    %800 = vmatprep.mubr.f32.mxu0 %v652
    %801 = vmatmul.mubr.f32.gmra.mrb[0].mxu0 %v558
    %v802 = vpop.f32.mrb[0].mxu0
    %v803 = vadd.f32 %v613, %v802
    %v804 = vpop.f32.mrb[0].mxu0
    %v805 = vadd.f32 %v617, %v804
    %806 = vmatprep.mubr.f32.mxu0 %v655
    %807 = vmatmul.mubr.f32.gmra.mrb[0].mxu0 %v560
    %v808 = vpop.f32.mrb[0].mxu0
    %v809 = vadd.f32 %v613, %v808
    %v810 = vpop.f32.mrb[0].mxu0
    %v811 = vadd.f32 %v617, %v810
    %812 = vmatprep.mubr.f32.mxu0 %v658
    %813 = vmatmul.mubr.f32.gmra.mrb[0].mxu0 %v562
    %v814 = vpop.f32.mrb[0].mxu0
    %v815 = vadd.f32 %v613, %v814
    %v816 = vpop.f32.mrb[0].mxu0
    %v817 = vadd.f32 %v617, %v816
    %818 = vmatprep.mubr.f32.mxu0 %v661
    %819 = vmatmul.mubr.f32.gmra.mrb[0].mxu0 %v564
    %v820 = vpop.f32.mrb[0].mxu0
    %v821 = vadd.f32 %v613, %v820
    %v822 = vpop.f32.mrb[0].mxu0
    %v823 = vadd.f32 %v617, %v822
    %824 = vmatprep.mubr.f32.mxu0 %v664
    %825 = vmatmul.mubr.f32.gmra.mrb[0].mxu0 %v566
    %v826 = vpop.f32.mrb[0].mxu0
    %v827 = vadd.f32 %v613, %v826
    %v828 = vpop.f32.mrb[0].mxu0
    %v829 = vadd.f32 %v617, %v828
    %830 = vmatprep.mubr.f32.mxu0 %v667
    %831 = vmatmul.mubr.f32.gmra.mrb[0].mxu0 %v568
    %v832 = vpop.f32.mrb[0].mxu0
    %v833 = vadd.f32 %v613, %v832
    %v834 = vpop.f32.mrb[0].mxu0
    %v835 = vadd.f32 %v617, %v834
    %836 = vdwg.mxu0
    %v837 = vmax.f32 %v743, 0.0
    %v838 = vmax.f32 %v745, 0.0
    %v839 = vmax.f32 %v749, 0.0
    %v840 = vmax.f32 %v751, 0.0
    %v841 = vmax.f32 %v755, 0.0
    %v842 = vmax.f32 %v757, 0.0
    %v843 = vmax.f32 %v761, 0.0
    %v844 = vmax.f32 %v763, 0.0
    %v845 = vmax.f32 %v767, 0.0
    %v846 = vmax.f32 %v769, 0.0
    %v847 = vmax.f32 %v773, 0.0
    %v848 = vmax.f32 %v775, 0.0
    %v849 = vmax.f32 %v779, 0.0
    %v850 = vmax.f32 %v781, 0.0
    %v851 = vmax.f32 %v785, 0.0
    %v852 = vmax.f32 %v787, 0.0
    %v853 = vmax.f32 %v791, 0.0
    %v854 = vmax.f32 %v793, 0.0
    %v855 = vmax.f32 %v797, 0.0
    %v856 = vmax.f32 %v799, 0.0
    %v857 = vmax.f32 %v803, 0.0
    %v858 = vmax.f32 %v805, 0.0
    %v859 = vmax.f32 %v809, 0.0
    %v860 = vmax.f32 %v811, 0.0
    %v861 = vmax.f32 %v815, 0.0
    %v862 = vmax.f32 %v817, 0.0
    %v863 = vmax.f32 %v821, 0.0
    %v864 = vmax.f32 %v823, 0.0
    %v865 = vmax.f32 %v827, 0.0
    %v866 = vmax.f32 %v829, 0.0
    %v867 = vmax.f32 %v833, 0.0
    %v868 = vmax.f32 %v835, 0.0
    %v869 = vld [vmem:[%s5] sm:$0x3]
    %v871 = vlaneseq
    %v872 = vshrl.u32 %v871, 7
    %v873 = vsub.s32 0, %v872
    %v874 = vrot.slane %v869, %v873
    %v875 = vlaneseq
    %v876 = vshrl.u32 %v875, 7
    %v877 = vsub.s32 1, %v876
    %v878 = vrot.slane %v869, %v877
    %v880 = vsel %vm620, %v878, 0
    %v883 = vsel %vm620, %v838, 0
    %v886 = vsel %vm620, %v840, 0
    %v889 = vsel %vm620, %v842, 0
    %v892 = vsel %vm620, %v844, 0
    %v895 = vsel %vm620, %v846, 0
    %v898 = vsel %vm620, %v848, 0
    %v901 = vsel %vm620, %v850, 0
    %v904 = vsel %vm620, %v852, 0
    %v907 = vsel %vm620, %v854, 0
    %v910 = vsel %vm620, %v856, 0
    %v913 = vsel %vm620, %v858, 0
    %v916 = vsel %vm620, %v860, 0
    %v919 = vsel %vm620, %v862, 0
    %v922 = vsel %vm620, %v864, 0
    %v925 = vsel %vm620, %v866, 0
    %v928 = vsel %vm620, %v868, 0
    %930 = vmatprep.subr.mxu0 %v883
    %931 = vmatpush1.xpose.msra.mxu0 %v837
    %932 = vmatprep.subr.mxu0 %v886
    %933 = vmatpush1.xpose.msra.mxu0 %v839
    %934 = vmatprep.subr.mxu0 %v889
    %935 = vmatpush1.xpose.msra.mxu0 %v841
    %936 = vmatprep.subr.mxu0 %v892
    %937 = vmatpush1.xpose.msra.mxu0 %v843
    %938 = vmatprep.subr.mxu0 %v895
    %939 = vmatpush1.xpose.msra.mxu0 %v845
    %940 = vmatprep.subr.mxu0 %v898
    %941 = vmatpush1.xpose.msra.mxu0 %v847
    %942 = vmatprep.subr.mxu0 %v901
    %943 = vmatpush1.xpose.msra.mxu0 %v849
    %944 = vmatprep.subr.mxu0 %v904
    %945 = vmatpush1.xpose.msra.mxu0 %v851
    %946 = vmatprep.subr.mxu0 %v907
    %947 = vmatpush1.xpose.msra.mxu0 %v853
    %948 = vmatprep.subr.mxu0 %v910
    %949 = vmatpush1.xpose.msra.mxu0 %v855
    %950 = vmatprep.subr.mxu0 %v913
    %951 = vmatpush1.xpose.msra.mxu0 %v857
    %952 = vmatprep.subr.mxu0 %v916
    %953 = vmatpush1.xpose.msra.mxu0 %v859
    %954 = vmatprep.subr.mxu0 %v919
    %955 = vmatpush1.xpose.msra.mxu0 %v861
    %956 = vmatprep.subr.mxu0 %v922
    %957 = vmatpush1.xpose.msra.mxu0 %v863
    %958 = vmatprep.subr.mxu0 %v925
    %959 = vmatpush1.xpose.msra.mxu0 %v865
    %960 = vmatprep.subr.mxu0 %v928
    %961 = vmatpush1.xpose.msra.mxu0 %v867
    %962 = vmatprep.subr.mxu0 0.0
    %963 = vmatpush1.xpose.msra.mxu0 0.0
    %964 = vmatprep.subr.mxu0 0.0
    %965 = vmatpush1.xpose.msra.mxu0 0.0
    %966 = vmatprep.subr.mxu0 0.0
    %967 = vmatpush1.xpose.msra.mxu0 0.0
    %968 = vmatprep.subr.mxu0 0.0
    %969 = vmatpush1.xpose.msra.mxu0 0.0
    %970 = vmatprep.subr.mxu0 0.0
    %971 = vmatpush1.xpose.msra.mxu0 0.0
    %972 = vmatprep.subr.mxu0 0.0
    %973 = vmatpush1.xpose.msra.mxu0 0.0
    %974 = vmatprep.subr.mxu0 0.0
    %975 = vmatpush1.xpose.msra.mxu0 0.0
    %976 = vmatprep.subr.mxu0 0.0
    %977 = vmatpush1.xpose.msra.mxu0 0.0
    %978 = vmatprep.subr.mxu0 0.0
    %979 = vmatpush1.xpose.msra.mxu0 0.0
    %980 = vmatprep.subr.mxu0 0.0
    %981 = vmatpush1.xpose.msra.mxu0 0.0
    %982 = vmatprep.subr.mxu0 0.0
    %983 = vmatpush1.xpose.msra.mxu0 0.0
    %984 = vmatprep.subr.mxu0 0.0
    %985 = vmatpush1.xpose.msra.mxu0 0.0
    %986 = vmatprep.subr.mxu0 0.0
    %987 = vmatpush1.xpose.msra.mxu0 0.0
    %988 = vmatprep.subr.mxu0 0.0
    %989 = vmatpush1.xpose.msra.mxu0 0.0
    %990 = vmatprep.subr.mxu0 0.0
    %991 = vmatpush1.xpose.msra.mxu0 0.0
    %992 = vmatprep.subr.mxu0 0.0
    %993 = vmatpush1.xpose.msra.mxu0 0.0
    %994 = vmatprep.mubr.f32.mxu0 %v880
    %995 = vmatmul.mubr.f32.gmra.mrb[0].mxu0 %v874
    %v996 = vpop.f32.mrb[0].mxu0
    %v997 = vadd.f32 0.0, %v996
    %v998 = vpop.f32.mrb[0].mxu0
    %999 = vdwg.mxu0
    %1000 = vst [vmem:[#allocation2] sm:$0x1] %v997
    // Predicated region
    $region26: #{tpu_custom_call.1} parent=1 // pred_check
      _
    $region27: #{tpu_custom_call.1} parent=1 // pred_check_branch
      %1002 = sbr.rel (0) target = $region29
    $region28: #{tpu_custom_call.1} parent=1 // pred_region
      %s1004 = ssub.s32 16, 16
      %1005 = vsyncadd [#allocation3], %s1004
      %s1007 = sshll.u32 [#allocation2], 4
      %s1008 = int_to_ptr.vmem [resolvable:$true] %s1007
      %1010 = dma.vmem_to_hbm [thread:$0]  %s1008, 16, %s6, [#allocation3]
    $region29: #{tpu_custom_call.1} parent=1 // pred_fallthru
      _
    // Predicated region
    $region30: #{tpu_custom_call.1} parent=1 // pred_check
      _
    $region31: #{tpu_custom_call.1} parent=1 // pred_check_branch
      %1012 = sbr.rel (0) target = $region33
    $region32: #{tpu_custom_call.1} parent=1 // pred_region
      %1013 = dma.done [#allocation3], 16
    $region33: #{tpu_custom_call.1} parent=1 // pred_fallthru
      _
    %1014 = vsyncpa [#allocation3], 1

</llo_original>
